<compile_context>
chip_gen: v5e
topology: v5e:2x2
jax: 0.10.0
libtpu: 0.0.40
codegen_flags: <defaults>
</compile_context>

<pallas_src>
import functools

import jax
import jax.numpy as jnp
from jax.experimental import pallas as pl
from jax.experimental.pallas import tpu as pltpu

_LANE = 128
# Scoped VMEM limit we request: raises v5e/v6e's small defaults, and stays well
# under v7x's 64 MiB physical VMEM per TensorCore.
_VMEM_LIMIT_BYTES = 48 * 1024 * 1024
# Budget per live (n_batch, tile_n) f32 block; double-buffered input + output
# gives 4 live blocks -> ~24 MiB, leaving headroom for params + Mosaic scratch.
_BLOCK_BUDGET_BYTES = 6 * 1024 * 1024
# Keep gamma/beta VMEM-resident (single fetch) while they are below this size.
_GB_RESIDENT_MAX_BYTES = 8 * 1024 * 1024


def _round_up(x, m):
    return ((x + m - 1) // m) * m


def _batchnorm_kernel(x_ref, gb_ref, o_ref, *, eps, tile_n, n_valid,
                      needs_mask, gb_resident):
    j = pl.program_id(0)
    x = x_ref[...].astype(jnp.float32)                       # (B, tile_n)

    if needs_mask:
        # Only the final (partial) neuron tile has out-of-range lanes; their
        # contents are unspecified, so zero them before the stats.  Those lanes
        # are never written back (masked vst on the last tile); this just keeps
        # inf/nan out of the lane-local math.  Identity on full tiles.
        col = j * tile_n + jax.lax.broadcasted_iota(jnp.int32, x.shape, 1)
        x = jnp.where(col < n_valid, x, 0.0)

    # Batch (sublane-axis) statistics; biased variance matches unbiased=False.
    mu = jnp.mean(x, axis=0, keepdims=True)                   # (1, tile_n)
    diff = x - mu
    var = jnp.mean(diff * diff, axis=0, keepdims=True)        # (1, tile_n)
    inv_std = jax.lax.rsqrt(var + eps)                        # EUP slot: ~free

    if gb_resident:
        # Params live in VMEM for the whole grid; slice this tile's columns.
        off = pl.multiple_of(j * tile_n, _LANE)
        gb = gb_ref[:, pl.ds(off, tile_n)]                    # (2, tile_n)
    else:
        gb = gb_ref[...]                                      # (2, tile_n)
    gamma = gb[0:1, :]
    beta = gb[1:2, :]

    o_ref[...] = (gamma * (diff * inv_std) + beta).astype(o_ref.dtype)


def custom_batchnorm_forward(x, gamma, beta, eps=1e-5):
    """Batch-norm forward matching CustomBatchNormAutograd.forward.

    Args:
      x:     (n_batch, n_neurons) float (f32 or bf16; stats computed in f32)
      gamma: (n_neurons,) float
      beta:  (n_neurons,) float
      eps:   stability constant
    Returns:
      (n_batch, n_neurons) array, same dtype as x.
    """
    assert x.ndim == 2, f"expected (n_batch, n_neurons), got {x.shape}"
    n_batch, n_neurons = x.shape
    assert gamma.shape == (n_neurons,) and beta.shape == (n_neurons,)

    # Whole batch column (double-buffered in + out at the minimum 128-lane tile)
    # must fit in VMEM for this single-pass formulation.
    min_live_bytes = 4 * n_batch * _LANE * 4
    if min_live_bytes > _VMEM_LIMIT_BYTES - (8 << 20):
        # TODO(synk): add a second "arbitrary" batch grid axis with streaming
        # sum / sum-of-squares VMEM accumulators (var = E[x^2] - mu^2) plus a
        # normalize pass for very large n_batch.
        raise NotImplementedError(
            f"n_batch={n_batch} too large for the single-pass batchnorm kernel")

    padded_min = _round_up(n_neurons, _LANE)
    # Largest lane-dense tile such that 4 live f32 blocks stay within budget.
    tile_by_budget = max(
        _LANE, (_BLOCK_BUDGET_BYTES // (n_batch * 4 * _LANE)) * _LANE)
    tile_n = max(_LANE, min(padded_min, tile_by_budget))
    # Keep the grid length >= 2 when possible so the neuron axis can split
    # across v7x's two TensorCores (near-free extra grid step on v5e/v6e).
    if tile_n >= padded_min and padded_min >= 2 * _LANE:
        tile_n = _round_up(padded_min // 2, _LANE)

    num_tiles = -(-n_neurons // tile_n)          # cdiv
    needs_mask = (n_neurons % tile_n) != 0

    # gamma/beta: stacked into one (2, num_tiles*tile_n) f32 array.  Only these
    # tiny params are padded (never x), so x/out HBM traffic stays at 2N bytes
    # and the batch statistics are exact.
    gb_padded = num_tiles * tile_n
    gb = jnp.stack([
        jnp.pad(gamma.astype(jnp.float32), (0, gb_padded - n_neurons)),
        jnp.pad(beta.astype(jnp.float32), (0, gb_padded - n_neurons)),
    ])
    gb_resident = (2 * gb_padded * 4) <= _GB_RESIDENT_MAX_BYTES
    if gb_resident:
        # Constant block index -> fetched once and kept VMEM-resident; the
        # kernel slices its tile with pl.ds at a lane-aligned offset.
        gb_spec = pl.BlockSpec((2, gb_padded), lambda j: (0, 0))
    else:
        # Fallback for very wide layers: one small per-step DMA (still a single
        # transfer for both params).
        gb_spec = pl.BlockSpec((2, tile_n), lambda j: (0, j))

    kernel = functools.partial(
        _batchnorm_kernel, eps=eps, tile_n=tile_n, n_valid=n_neurons,
        needs_mask=needs_mask, gb_resident=gb_resident)

    return pl.pallas_call(
        kernel,
        out_shape=jax.ShapeDtypeStruct((n_batch, n_neurons), x.dtype),
        grid_spec=pltpu.PrefetchScalarGridSpec(
            num_scalar_prefetch=0,
            grid=(num_tiles,),
            in_specs=[
                # TODO(synk): pipeline_mode=pl.Buffered(3) on x if a v7x profile
                # still shows exposed DMA at grid-step boundaries.
                pl.BlockSpec((n_batch, tile_n), lambda j: (0, j)),
                gb_spec,
            ],
            out_specs=pl.BlockSpec((n_batch, tile_n), lambda j: (0, j)),
        ),
        compiler_params=pltpu.CompilerParams(
            # Neuron tiles are independent; "parallel" lets v7x shard them over
            # its two TensorCores (no-op on v5e/v6e).  Switch to
            # pltpu.CORE_PARALLEL if a profile shows only one TC busy.
            dimension_semantics=("parallel",),
            vmem_limit_bytes=_VMEM_LIMIT_BYTES,
        ),
    )(x, gb)


def _reference_forward(x, gamma, beta, eps=1e-5):
    mu = jnp.mean(x, axis=0)
    var = jnp.mean((x - mu) ** 2, axis=0)  # unbiased=False
    x_hat = (x - mu) / jnp.sqrt(var + eps)
    return gamma * x_hat + beta


if __name__ == "__main__":
    # Small shapes consistent with an MLP batch-norm layer.
    n_batch, n_neurons = 8, 32
    key = jax.random.PRNGKey(0)
    x = jax.random.normal(key, (n_batch, n_neurons), dtype=jnp.float32)

    # Deterministic parameter init matching nn.Parameter(torch.ones/zeros).
    gamma = jnp.ones((n_neurons,), dtype=jnp.float32)
    beta = jnp.zeros((n_neurons,), dtype=jnp.float32)

    out = custom_batchnorm_forward(x, gamma, beta, eps=1e-5)
    out = jax.block_until_ready(out)

    ref = _reference_forward(x, gamma, beta, eps=1e-5)
    assert out.shape == x.shape, f"shape changed: {x.shape} -> {out.shape}"
    assert jnp.allclose(out, ref, atol=1e-5, rtol=1e-5), "mismatch vs reference"

    # Multi-tile, non-128-divisible case: exercises the masked last tile,
    # the grid>=2 split and non-trivial gamma/beta.
    n_batch2, n_neurons2 = 16, 1000
    x2 = jax.random.normal(jax.random.PRNGKey(1), (n_batch2, n_neurons2),
                           dtype=jnp.float32)
    g2 = jax.random.normal(jax.random.PRNGKey(2), (n_neurons2,), dtype=jnp.float32)
    b2 = jax.random.normal(jax.random.PRNGKey(3), (n_neurons2,), dtype=jnp.float32)
    out2 = jax.block_until_ready(custom_batchnorm_forward(x2, g2, b2, eps=1e-5))
    ref2 = _reference_forward(x2, g2, b2, eps=1e-5)
    assert out2.shape == x2.shape
    assert jnp.allclose(out2, ref2, atol=1e-4, rtol=1e-4), "mismatch (ragged case)"
    assert jnp.all(jnp.isfinite(out2)), "non-finite values leaked into output"

    print("KERNEL_OK")
</pallas_src>

<mosaic_0001>
module attributes {stable_mosaic.version = 11 : i64} {
  func.func @_batchnorm_kernel(%arg0: i32, %arg1: memref<8x128xf32, #tpu.memory_space<vmem>>, %arg2: memref<2x128xf32, #tpu.memory_space<vmem>>, %arg3: memref<8x128xf32, #tpu.memory_space<vmem>>) attributes {dimension_semantics = [#tpu.dimension_semantics<parallel>], iteration_bounds = array<i64: 1>, scalar_prefetch = 0 : i64, scratch_operands = 0 : i64, tpu.core_type = #tpu.core_type<tc>, window_params = [{transform_indices = @transform_0, window_bounds = array<i64: 8, 128>}, {pipeline_mode = #tpu.pipeline_mode<synchronous>, transform_indices = @transform_1, window_bounds = array<i64: 2, 128>}, {transform_indices = @transform_2, window_bounds = array<i64: 8, 128>}]} {
    %c0 = arith.constant 0 : index
    %c0_0 = arith.constant 0 : index
    %0 = vector.load %arg1[%c0, %c0_0] : memref<8x128xf32, #tpu.memory_space<vmem>>, vector<8x128xf32>
    %c128_i32 = arith.constant 128 : i32
    %1 = arith.muli %arg0, %c128_i32 : i32
    %2 = tpu.iota {dimensions = array<i32: 1>} : vector<8x128xi32>
    %3 = vector.broadcast %1 : i32 to vector<8x128xi32>
    %4 = arith.addi %3, %2 : vector<8x128xi32>
    %c32_i32 = arith.constant 32 : i32
    %5 = vector.broadcast %c32_i32 : i32 to vector<8x128xi32>
    %6 = arith.cmpi slt, %4, %5 : vector<8x128xi32>
    %cst = arith.constant 0.000000e+00 : f32
    %7 = vector.broadcast %cst : f32 to vector<8x128xf32>
    %8 = arith.select %6, %0, %7 : vector<8x128xi1>, vector<8x128xf32>
    %cst_1 = arith.constant dense<0.000000e+00> : vector<128xf32>
    %9 = vector.multi_reduction <add>, %8, %cst_1 [0] : vector<8x128xf32> to vector<128xf32>
    %10 = vector.shape_cast %9 : vector<128xf32> to vector<1x128xf32>
    %cst_2 = arith.constant 8.000000e+00 : f32
    %11 = vector.broadcast %cst_2 : f32 to vector<1x128xf32>
    %12 = arith.divf %10, %11 : vector<1x128xf32>
    %13 = vector.broadcast %12 : vector<1x128xf32> to vector<8x128xf32>
    %14 = arith.subf %8, %13 : vector<8x128xf32>
    %15 = arith.mulf %14, %14 : vector<8x128xf32>
    %cst_3 = arith.constant dense<0.000000e+00> : vector<128xf32>
    %16 = vector.multi_reduction <add>, %15, %cst_3 [0] : vector<8x128xf32> to vector<128xf32>
    %17 = vector.shape_cast %16 : vector<128xf32> to vector<1x128xf32>
    %cst_4 = arith.constant 8.000000e+00 : f32
    %18 = vector.broadcast %cst_4 : f32 to vector<1x128xf32>
    %19 = arith.divf %17, %18 : vector<1x128xf32>
    %cst_5 = arith.constant 9.99999974E-6 : f32
    %20 = vector.broadcast %cst_5 : f32 to vector<1x128xf32>
    %21 = arith.addf %19, %20 : vector<1x128xf32>
    %22 = math.rsqrt %21 : vector<1x128xf32>
    %c128_i32_6 = arith.constant 128 : i32
    %23 = arith.muli %arg0, %c128_i32_6 : i32
    %24 = tpu.assume_multiple %23, 128 : i32
    %c0_7 = arith.constant 0 : index
    %25 = arith.index_cast %24 : i32 to index
    %26 = vector.load %arg2[%c0_7, %25] : memref<2x128xf32, #tpu.memory_space<vmem>>, vector<2x128xf32>
    %27 = vector.extract_strided_slice %26 {offsets = [0, 0], sizes = [1, 128], strides = [1, 1]} : vector<2x128xf32> to vector<1x128xf32>
    %28 = vector.extract_strided_slice %26 {offsets = [1, 0], sizes = [1, 128], strides = [1, 1]} : vector<2x128xf32> to vector<1x128xf32>
    %29 = vector.broadcast %22 : vector<1x128xf32> to vector<8x128xf32>
    %30 = arith.mulf %14, %29 : vector<8x128xf32>
    %31 = vector.broadcast %27 : vector<1x128xf32> to vector<8x128xf32>
    %32 = arith.mulf %31, %30 : vector<8x128xf32>
    %33 = vector.broadcast %28 : vector<1x128xf32> to vector<8x128xf32>
    %34 = arith.addf %32, %33 : vector<8x128xf32>
    %c0_8 = arith.constant 0 : index
    %c0_9 = arith.constant 0 : index
    %35 = vector.load %arg3[%c0_8, %c0_9] : memref<8x128xf32, #tpu.memory_space<vmem>>, vector<8x128xf32>
    tpu.vector_store %arg3[%c0_8, %c0_9], %34 {strides = array<i32>} : memref<8x128xf32, #tpu.memory_space<vmem>>, vector<8x128xf32>,
    return
  }
  func.func @transform_0(%arg0: i32) -> (i32, i32) {
    %c0_i32 = arith.constant 0 : i32
    %c0_i32_0 = arith.constant 0 : i32
    return %c0_i32, %arg0 : i32, i32
  }
  func.func @transform_1(%arg0: i32) -> (i32, i32) {
    %c0_i32 = arith.constant 0 : i32
    %c0_i32_0 = arith.constant 0 : i32
    %c0_i32_1 = arith.constant 0 : i32
    return %c0_i32, %c0_i32_0 : i32, i32
  }
  func.func @transform_2(%arg0: i32) -> (i32, i32) {
    %c0_i32 = arith.constant 0 : i32
    %c0_i32_0 = arith.constant 0 : i32
    return %c0_i32, %arg0 : i32, i32
  }
}

</mosaic_0001>

<llo_original>
// kernel: tpu_custom_call.1
$region0: #{tpu_custom_call.1}
  #allocation0 [shape = 'u32[]', space=smem, size = 0x4, offset = 0x4, fixed_abs, tag = 'smem constant byte address 0x4 - core index']
  #allocation1 [shape = 'u32[72,128]{1,0:T(1,128)}', space=vmem, size = 0x9000, scoped, tag = 'internal scratch']
  %s0 = inlined_call_operand.hbm [shape: f32[8,32], index: 0, kind: input, shape index: {}]
  %s1 = inlined_call_operand.hbm [shape: f32[2,128], index: 1, kind: input, shape index: {}]
  %s2 = inlined_call_operand.hbm [shape: f32[8,32], index: 2, kind: output, shape index: {}]
  %s3 = sld [smem:[#allocation0]]
  $region26: #{tpu_custom_call.1} parent=0
    _
  %s5 = ssub.s32 1, %s3
  %s6 = scalar_select 0, %s5, %s3
  $region1: #{tpu_custom_call.1} parent=0
    #allocation2 [shape = 'u8[4096]{0}', space=vmem, size = 0x1000, scoped, tag = 'input window, operand 0, single buffered']
    #allocation3 [shape = 's32[1]{0}', space=sflag, size = 0x4, scoped, tag = 'scoped memory for tpu_custom_call.1']
    #allocation4 [shape = 's32[1]{0}', space=sflag, size = 0x4, scoped, tag = 'scoped memory for tpu_custom_call.1']
    #allocation5 [shape = 'u8[1024]{0}', space=vmem, size = 0x400, scoped, tag = 'input window, operand 1, single buffered']
    #allocation6 [shape = 's32[1]{0}', space=sflag, size = 0x4, scoped, tag = 'scoped memory for tpu_custom_call.1']
    #allocation7 [shape = 'u8[4096]{0}', space=vmem, size = 0x1000, scoped, tag = 'output window, operand 0, single buffered']
    %7 = vsyncpa [#allocation3], 0
    %8 = vsyncpa [#allocation6], 0
    %9 = vsyncpa [#allocation4], 0
    // Predicated region
    $region2: #{tpu_custom_call.1} parent=1 // pred_check
      _
    $region3: #{tpu_custom_call.1} parent=1 // pred_check_branch
      %11 = sbr.rel (0) target = $region5
    $region4: #{tpu_custom_call.1} parent=1 // pred_region
      %13 = vsyncadd [#allocation3], 0
      %s15 = sshll.u32 %s0, 4
      %s16 = int_to_ptr.hbm [resolvable:$true] %s15
      %s17 = sshll.u32 [#allocation2], 4
      %s18 = int_to_ptr.vmem [resolvable:$true] %s17
      %20 = dma.hbm_to_vmem [thread:$0]  %s16, 128, %s18, [#allocation3]
    $region5: #{tpu_custom_call.1} parent=1 // pred_fallthru
      _
    // Predicated region
    $region6: #{tpu_custom_call.1} parent=1 // pred_check
      _
    $region7: #{tpu_custom_call.1} parent=1 // pred_check_branch
      %22 = sbr.rel (0) target = $region9
    $region8: #{tpu_custom_call.1} parent=1 // pred_region
      %24 = vsyncadd [#allocation6], 0
      %s26 = sshll.u32 %s1, 4
      %s27 = int_to_ptr.hbm [resolvable:$true] %s26
      %s28 = sshll.u32 [#allocation5], 4
      %s29 = int_to_ptr.vmem [resolvable:$true] %s28
      %31 = dma.hbm_to_vmem [thread:$0]  %s27, 32, %s29, [#allocation6]
    $region9: #{tpu_custom_call.1} parent=1 // pred_fallthru
      _
    // Predicated region
    $region10: #{tpu_custom_call.1} parent=1 // pred_check
      _
    $region11: #{tpu_custom_call.1} parent=1 // pred_check_branch
      %33 = sbr.rel (0) target = $region13
    $region12: #{tpu_custom_call.1} parent=1 // pred_region
      %35 = dma.done [#allocation3], 128
    $region13: #{tpu_custom_call.1} parent=1 // pred_fallthru
      _
    // Predicated region
    $region14: #{tpu_custom_call.1} parent=1 // pred_check
      _
    $region15: #{tpu_custom_call.1} parent=1 // pred_check_branch
      %37 = sbr.rel (0) target = $region17
    $region16: #{tpu_custom_call.1} parent=1 // pred_region
      %39 = dma.done [#allocation6], 32
    $region17: #{tpu_custom_call.1} parent=1 // pred_fallthru
      _
    %v40 = vld [vmem:[#allocation2] sm:$0xff]
    %s41 = smul.u32 0, 128
    %v42 = vlaneseq
    %v43 = vand.u32 %v42, 127
    %v44 = vstv %s41
    %v45 = vadd.s32 %v44, %v43
    %vm46 = vcmp.lt.s32.totalorder %v45, 32
    %v47 = vsel %vm46, %v40, 0.0
    %v48 = vrot.slane %v47, 4
    %v49 = vadd.f32 %v47, %v48
    %v50 = vrot.slane %v49, 2
    %v51 = vadd.f32 %v49, %v50
    %v52 = vrot.slane %v51, 1
    %v53 = vadd.f32 %v51, %v52
    %v54 = vrcp.pop 8.0
    %v55 = vmul.f32 8.0, %v54
    %v56 = vsub.f32 1.0, %v55
    %v57 = vmul.f32 %v54, %v56
    %v58 = vadd.f32 %v54, %v57
    %vm59 = vweird.f32 %v54
    %v60 = vsel %vm59, %v54, %v58
    %v61 = vmul.f32 %v53, %v60
    %v62 = vsub.f32 %v47, %v61
    %v63 = vmul.f32 %v62, %v62
    %v64 = vrot.slane %v63, 4
    %v65 = vadd.f32 %v63, %v64
    %v66 = vrot.slane %v65, 2
    %v67 = vadd.f32 %v65, %v66
    %v68 = vrot.slane %v67, 1
    %v69 = vadd.f32 %v67, %v68
    %v70 = vmul.f32 %v69, %v60
    %v71 = vadd.f32 %v70, 1e-05
    %v72 = vrsqrt.pop %v71
    %v73 = vmul.f32 %v72, %v71
    %v74 = vmul.f32 %v73, %v72
    %v75 = vmul.f32 0.5, %v74
    %v76 = vsub.f32 1.5, %v75
    %v77 = vmul.f32 %v72, %v76
    %vm78 = vweird.f32 %v71
    %vm79 = vweird.f32 %v72
    %vm80 = vmor %vm78, %vm79
    %v81 = vsel %vm80, %v72, %v77
    %s82 = sshra.s32 %s41, 7
    %s83 = sand.u32 %s41, 127
    %s84 = scalar_lea.vmem [#allocation5], %s82
    %v85 = vld [vmem:[%s84] sm:$0x3]
    %v86 = vmul.f32 %v62, %v81
    %v87 = vperm.slane %v85, 0
    %v88 = vmul.f32 %v87, %v86
    %v89 = vperm.slane %v85, 1
    %v90 = vadd.f32 %v88, %v89
    %91 = vst [vmem:[#allocation7] sm:$0xff] %v90
    // Predicated region
    $region18: #{tpu_custom_call.1} parent=1 // pred_check
      _
    $region19: #{tpu_custom_call.1} parent=1 // pred_check_branch
      %93 = sbr.rel (0) target = $region21
    $region20: #{tpu_custom_call.1} parent=1 // pred_region
      %95 = vsyncadd [#allocation4], 0
      %s97 = sshll.u32 [#allocation7], 4
      %s98 = int_to_ptr.vmem [resolvable:$true] %s97
      %s99 = sshll.u32 %s2, 4
      %s100 = int_to_ptr.hbm [resolvable:$true] %s99
      %102 = dma.vmem_to_hbm [thread:$0]  %s98, 128, %s100, [#allocation4]
    $region21: #{tpu_custom_call.1} parent=1 // pred_fallthru
      _
    // Predicated region
    $region22: #{tpu_custom_call.1} parent=1 // pred_check
      _
    $region23: #{tpu_custom_call.1} parent=1 // pred_check_branch
      %104 = sbr.rel (0) target = $region25
    $region24: #{tpu_custom_call.1} parent=1 // pred_region
      %106 = dma.done [#allocation4], 128
    $region25: #{tpu_custom_call.1} parent=1 // pred_fallthru
      _
    %107 = vsyncpa [#allocation3], 1
    %108 = vsyncpa [#allocation6], 1
    %109 = vsyncpa [#allocation4], 1

</llo_original>
